<compile_context>
chip_gen: v7x
topology: tpu7x:2x2x1
jax: 0.10.0
libtpu: 0.0.40
codegen_flags: <defaults>
</compile_context>

<pallas_src>
import functools

import jax
import jax.numpy as jnp
from jax.experimental import pallas as pl
from jax.experimental.pallas import tpu as pltpu


def mlp_kernel(xT_ref, w1_ref, b1_ref, w2_ref, b2_ref, w3_ref, b3_ref, o_ref):
    n_f, _ = xT_ref.shape          # (F, TB): features on sublanes, batch on lanes
    h1_dim = w1_ref.shape[1]       # 5
    h2_dim = w2_ref.shape[1]       # 3

    x = xT_ref[...]                # (F, TB) f32

    # fc1 + ReLU: unrolled VPU broadcast-FMA (weights are SMEM scalars, no MXU).
    h1 = []
    for j in range(h1_dim):
        acc = x[0:1, :] * w1_ref[0, j]
        for k in range(1, n_f):
            acc = acc + x[k:k + 1, :] * w1_ref[k, j]
        h1.append(jnp.maximum(acc + b1_ref[0, j], 0.0))       # (1, TB)

    # fc2 + ReLU
    h2 = []
    for j in range(h2_dim):
        acc = h1[0] * w2_ref[0, j]
        for k in range(1, h1_dim):
            acc = acc + h1[k] * w2_ref[k, j]
        h2.append(jnp.maximum(acc + b2_ref[0, j], 0.0))       # (1, TB)

    # fc3 + sigmoid (exp issues on the EUP slot)
    z = h2[0] * w3_ref[0, 0]
    for k in range(1, h2_dim):
        z = z + h2[k] * w3_ref[k, 0]
    z = z + b3_ref[0, 0]
    o_ref[...] = 1.0 / (1.0 + jnp.exp(-z))                    # lane-dense (1, TB) store


@functools.partial(jax.jit, static_argnames=("tb",))
def net_forward(x, params, *, tb=512):
    """x: (B, n_features) float32 -> (B, 1) float32 (matches PyTorch Net.forward)."""
    w1, b1, w2, b2, w3, b3 = params
    B, F = x.shape
    n_tiles = -(-B // tb)            # ceil(B / tb)
    Bp = n_tiles * tb

    # Pad batch to a tile multiple and go lane-major.  Padding rows are zeros ->
    # finite garbage outputs that are sliced off below.
    xT = jnp.pad(x, ((0, Bp - B), (0, 0))).T                  # (F, Bp)

    smem = pltpu.MemorySpace.SMEM
    const = lambda a: pl.BlockSpec(a.shape, lambda i: (0, 0), memory_space=smem)

    out_t = pl.pallas_call(
        mlp_kernel,
        out_shape=jax.ShapeDtypeStruct((1, Bp), jnp.float32),
        grid=(n_tiles,),
        in_specs=[
            pl.BlockSpec((F, tb), lambda i: (0, i)),          # x tile: batch on lanes
            const(w1), const(b1), const(w2), const(b2), const(w3), const(b3),
        ],
        out_specs=pl.BlockSpec((1, tb), lambda i: (0, i)),    # lane-dense output slab
        compiler_params=pltpu.CompilerParams(
            dimension_semantics=("parallel",),                # megacore sharding on v7x
        ),
        cost_estimate=pl.CostEstimate(
            flops=2 * Bp * (F * 5 + 5 * 3 + 3 * 1),
            transcendentals=Bp,
            bytes_accessed=(Bp * F + Bp) * 4,
        ),
    )(xT, w1, b1, w2, b2, w3, b3)

    return out_t[0, :B][:, None]                              # (B, 1)


def init_params(key, n_features):
    # Mimics PyTorch Linear's U(-1/sqrt(fan_in), +1/sqrt(fan_in)) init.
    # Weights stored as (in, out) so y = x @ W + b  (== x @ W_pt.T + b).
    def linear(k, fan_in, fan_out):
        kw, kb = jax.random.split(k)
        bound = 1.0 / jnp.sqrt(fan_in)
        w = jax.random.uniform(kw, (fan_in, fan_out), jnp.float32, -bound, bound)
        b = jax.random.uniform(kb, (1, fan_out), jnp.float32, -bound, bound)
        return w, b

    k1, k2, k3 = jax.random.split(key, 3)
    w1, b1 = linear(k1, n_features, 5)
    w2, b2 = linear(k2, 5, 3)
    w3, b3 = linear(k3, 3, 1)
    return w1, b1, w2, b2, w3, b3


def reference_forward(x, params):
    w1, b1, w2, b2, w3, b3 = params
    h1 = jnp.maximum(x @ w1 + b1, 0.0)
    h2 = jnp.maximum(h1 @ w2 + b2, 0.0)
    return jax.nn.sigmoid(h2 @ w3 + b3)


if __name__ == "__main__":
    key = jax.random.PRNGKey(0)
    kx, kp = jax.random.split(key)

    # Ragged batch exercises the padding path and a multi-step (4-tile) parallel grid.
    batch, n_features = 777, 6
    x = jax.random.normal(kx, (batch, n_features), jnp.float32)
    params = init_params(kp, n_features)

    out = net_forward(x, params, tb=256)
    out = jax.block_until_ready(out)

    ref = reference_forward(x, params)
    assert out.shape == (batch, 1)
    assert jnp.allclose(out, ref, atol=1e-5, rtol=1e-5), float(jnp.max(jnp.abs(out - ref)))

    print("KERNEL_OK")
</pallas_src>

<mosaic_0001>
module attributes {stable_mosaic.version = 11 : i64} {
  func.func @mlp_kernel(%arg0: i32, %arg1: memref<6x256xf32, #tpu.memory_space<vmem>>, %arg2: memref<6x5xf32, #tpu.memory_space<smem>>, %arg3: memref<1x5xf32, #tpu.memory_space<smem>>, %arg4: memref<5x3xf32, #tpu.memory_space<smem>>, %arg5: memref<1x3xf32, #tpu.memory_space<smem>>, %arg6: memref<3x1xf32, #tpu.memory_space<smem>>, %arg7: memref<1x1xf32, #tpu.memory_space<smem>>, %arg8: memref<1x256xf32, #tpu.memory_space<vmem>>) attributes {dimension_semantics = [#tpu.dimension_semantics<parallel>], iteration_bounds = array<i64: 4>, scalar_prefetch = 0 : i64, scratch_operands = 0 : i64, tpu.core_type = #tpu.core_type<tc>, window_params = [{transform_indices = @transform_0, window_bounds = array<i64: 6, 256>}, {transform_indices = @transform_1, window_bounds = array<i64: 6, 5>}, {transform_indices = @transform_2, window_bounds = array<i64: 1, 5>}, {transform_indices = @transform_3, window_bounds = array<i64: 5, 3>}, {transform_indices = @transform_4, window_bounds = array<i64: 1, 3>}, {transform_indices = @transform_5, window_bounds = array<i64: 3, 1>}, {transform_indices = @transform_6, window_bounds = array<i64: 1, 1>}, {transform_indices = @transform_7, window_bounds = array<i64: 1, 256>}]} {
    %c0 = arith.constant 0 : index
    %c0_0 = arith.constant 0 : index
    %0 = vector.load %arg1[%c0, %c0_0] : memref<6x256xf32, #tpu.memory_space<vmem>>, vector<6x256xf32>
    %1 = vector.extract_strided_slice %0 {offsets = [0, 0], sizes = [1, 256], strides = [1, 1]} : vector<6x256xf32> to vector<1x256xf32>
    %c0_1 = arith.constant 0 : index
    %c0_2 = arith.constant 0 : index
    %2 = memref.load %arg2[%c0_1, %c0_2] : memref<6x5xf32, #tpu.memory_space<smem>>
    %3 = vector.broadcast %2 : f32 to vector<1x256xf32>
    %4 = arith.mulf %1, %3 : vector<1x256xf32>
    %5 = vector.extract_strided_slice %0 {offsets = [1, 0], sizes = [1, 256], strides = [1, 1]} : vector<6x256xf32> to vector<1x256xf32>
    %c1 = arith.constant 1 : index
    %c0_3 = arith.constant 0 : index
    %6 = memref.load %arg2[%c1, %c0_3] : memref<6x5xf32, #tpu.memory_space<smem>>
    %7 = vector.broadcast %6 : f32 to vector<1x256xf32>
    %8 = arith.mulf %5, %7 : vector<1x256xf32>
    %9 = arith.addf %4, %8 : vector<1x256xf32>
    %10 = vector.extract_strided_slice %0 {offsets = [2, 0], sizes = [1, 256], strides = [1, 1]} : vector<6x256xf32> to vector<1x256xf32>
    %c2 = arith.constant 2 : index
    %c0_4 = arith.constant 0 : index
    %11 = memref.load %arg2[%c2, %c0_4] : memref<6x5xf32, #tpu.memory_space<smem>>
    %12 = vector.broadcast %11 : f32 to vector<1x256xf32>
    %13 = arith.mulf %10, %12 : vector<1x256xf32>
    %14 = arith.addf %9, %13 : vector<1x256xf32>
    %15 = vector.extract_strided_slice %0 {offsets = [3, 0], sizes = [1, 256], strides = [1, 1]} : vector<6x256xf32> to vector<1x256xf32>
    %c3 = arith.constant 3 : index
    %c0_5 = arith.constant 0 : index
    %16 = memref.load %arg2[%c3, %c0_5] : memref<6x5xf32, #tpu.memory_space<smem>>
    %17 = vector.broadcast %16 : f32 to vector<1x256xf32>
    %18 = arith.mulf %15, %17 : vector<1x256xf32>
    %19 = arith.addf %14, %18 : vector<1x256xf32>
    %20 = vector.extract_strided_slice %0 {offsets = [4, 0], sizes = [1, 256], strides = [1, 1]} : vector<6x256xf32> to vector<1x256xf32>
    %c4 = arith.constant 4 : index
    %c0_6 = arith.constant 0 : index
    %21 = memref.load %arg2[%c4, %c0_6] : memref<6x5xf32, #tpu.memory_space<smem>>
    %22 = vector.broadcast %21 : f32 to vector<1x256xf32>
    %23 = arith.mulf %20, %22 : vector<1x256xf32>
    %24 = arith.addf %19, %23 : vector<1x256xf32>
    %25 = vector.extract_strided_slice %0 {offsets = [5, 0], sizes = [1, 256], strides = [1, 1]} : vector<6x256xf32> to vector<1x256xf32>
    %c5 = arith.constant 5 : index
    %c0_7 = arith.constant 0 : index
    %26 = memref.load %arg2[%c5, %c0_7] : memref<6x5xf32, #tpu.memory_space<smem>>
    %27 = vector.broadcast %26 : f32 to vector<1x256xf32>
    %28 = arith.mulf %25, %27 : vector<1x256xf32>
    %29 = arith.addf %24, %28 : vector<1x256xf32>
    %c0_8 = arith.constant 0 : index
    %c0_9 = arith.constant 0 : index
    %30 = memref.load %arg3[%c0_8, %c0_9] : memref<1x5xf32, #tpu.memory_space<smem>>
    %31 = vector.broadcast %30 : f32 to vector<1x256xf32>
    %32 = arith.addf %29, %31 : vector<1x256xf32>
    %cst = arith.constant 0.000000e+00 : f32
    %33 = vector.broadcast %cst : f32 to vector<1x256xf32>
    %34 = arith.maximumf %32, %33 : vector<1x256xf32>
    %35 = vector.extract_strided_slice %0 {offsets = [0, 0], sizes = [1, 256], strides = [1, 1]} : vector<6x256xf32> to vector<1x256xf32>
    %c0_10 = arith.constant 0 : index
    %c1_11 = arith.constant 1 : index
    %36 = memref.load %arg2[%c0_10, %c1_11] : memref<6x5xf32, #tpu.memory_space<smem>>
    %37 = vector.broadcast %36 : f32 to vector<1x256xf32>
    %38 = arith.mulf %35, %37 : vector<1x256xf32>
    %39 = vector.extract_strided_slice %0 {offsets = [1, 0], sizes = [1, 256], strides = [1, 1]} : vector<6x256xf32> to vector<1x256xf32>
    %c1_12 = arith.constant 1 : index
    %c1_13 = arith.constant 1 : index
    %40 = memref.load %arg2[%c1_12, %c1_13] : memref<6x5xf32, #tpu.memory_space<smem>>
    %41 = vector.broadcast %40 : f32 to vector<1x256xf32>
    %42 = arith.mulf %39, %41 : vector<1x256xf32>
    %43 = arith.addf %38, %42 : vector<1x256xf32>
    %44 = vector.extract_strided_slice %0 {offsets = [2, 0], sizes = [1, 256], strides = [1, 1]} : vector<6x256xf32> to vector<1x256xf32>
    %c2_14 = arith.constant 2 : index
    %c1_15 = arith.constant 1 : index
    %45 = memref.load %arg2[%c2_14, %c1_15] : memref<6x5xf32, #tpu.memory_space<smem>>
    %46 = vector.broadcast %45 : f32 to vector<1x256xf32>
    %47 = arith.mulf %44, %46 : vector<1x256xf32>
    %48 = arith.addf %43, %47 : vector<1x256xf32>
    %49 = vector.extract_strided_slice %0 {offsets = [3, 0], sizes = [1, 256], strides = [1, 1]} : vector<6x256xf32> to vector<1x256xf32>
    %c3_16 = arith.constant 3 : index
    %c1_17 = arith.constant 1 : index
    %50 = memref.load %arg2[%c3_16, %c1_17] : memref<6x5xf32, #tpu.memory_space<smem>>
    %51 = vector.broadcast %50 : f32 to vector<1x256xf32>
    %52 = arith.mulf %49, %51 : vector<1x256xf32>
    %53 = arith.addf %48, %52 : vector<1x256xf32>
    %54 = vector.extract_strided_slice %0 {offsets = [4, 0], sizes = [1, 256], strides = [1, 1]} : vector<6x256xf32> to vector<1x256xf32>
    %c4_18 = arith.constant 4 : index
    %c1_19 = arith.constant 1 : index
    %55 = memref.load %arg2[%c4_18, %c1_19] : memref<6x5xf32, #tpu.memory_space<smem>>
    %56 = vector.broadcast %55 : f32 to vector<1x256xf32>
    %57 = arith.mulf %54, %56 : vector<1x256xf32>
    %58 = arith.addf %53, %57 : vector<1x256xf32>
    %59 = vector.extract_strided_slice %0 {offsets = [5, 0], sizes = [1, 256], strides = [1, 1]} : vector<6x256xf32> to vector<1x256xf32>
    %c5_20 = arith.constant 5 : index
    %c1_21 = arith.constant 1 : index
    %60 = memref.load %arg2[%c5_20, %c1_21] : memref<6x5xf32, #tpu.memory_space<smem>>
    %61 = vector.broadcast %60 : f32 to vector<1x256xf32>
    %62 = arith.mulf %59, %61 : vector<1x256xf32>
    %63 = arith.addf %58, %62 : vector<1x256xf32>
    %c0_22 = arith.constant 0 : index
    %c1_23 = arith.constant 1 : index
    %64 = memref.load %arg3[%c0_22, %c1_23] : memref<1x5xf32, #tpu.memory_space<smem>>
    %65 = vector.broadcast %64 : f32 to vector<1x256xf32>
    %66 = arith.addf %63, %65 : vector<1x256xf32>
    %cst_24 = arith.constant 0.000000e+00 : f32
    %67 = vector.broadcast %cst_24 : f32 to vector<1x256xf32>
    %68 = arith.maximumf %66, %67 : vector<1x256xf32>
    %69 = vector.extract_strided_slice %0 {offsets = [0, 0], sizes = [1, 256], strides = [1, 1]} : vector<6x256xf32> to vector<1x256xf32>
    %c0_25 = arith.constant 0 : index
    %c2_26 = arith.constant 2 : index
    %70 = memref.load %arg2[%c0_25, %c2_26] : memref<6x5xf32, #tpu.memory_space<smem>>
    %71 = vector.broadcast %70 : f32 to vector<1x256xf32>
    %72 = arith.mulf %69, %71 : vector<1x256xf32>
    %73 = vector.extract_strided_slice %0 {offsets = [1, 0], sizes = [1, 256], strides = [1, 1]} : vector<6x256xf32> to vector<1x256xf32>
    %c1_27 = arith.constant 1 : index
    %c2_28 = arith.constant 2 : index
    %74 = memref.load %arg2[%c1_27, %c2_28] : memref<6x5xf32, #tpu.memory_space<smem>>
    %75 = vector.broadcast %74 : f32 to vector<1x256xf32>
    %76 = arith.mulf %73, %75 : vector<1x256xf32>
    %77 = arith.addf %72, %76 : vector<1x256xf32>
    %78 = vector.extract_strided_slice %0 {offsets = [2, 0], sizes = [1, 256], strides = [1, 1]} : vector<6x256xf32> to vector<1x256xf32>
    %c2_29 = arith.constant 2 : index
    %c2_30 = arith.constant 2 : index
    %79 = memref.load %arg2[%c2_29, %c2_30] : memref<6x5xf32, #tpu.memory_space<smem>>
    %80 = vector.broadcast %79 : f32 to vector<1x256xf32>
    %81 = arith.mulf %78, %80 : vector<1x256xf32>
    %82 = arith.addf %77, %81 : vector<1x256xf32>
    %83 = vector.extract_strided_slice %0 {offsets = [3, 0], sizes = [1, 256], strides = [1, 1]} : vector<6x256xf32> to vector<1x256xf32>
    %c3_31 = arith.constant 3 : index
    %c2_32 = arith.constant 2 : index
    %84 = memref.load %arg2[%c3_31, %c2_32] : memref<6x5xf32, #tpu.memory_space<smem>>
    %85 = vector.broadcast %84 : f32 to vector<1x256xf32>
    %86 = arith.mulf %83, %85 : vector<1x256xf32>
    %87 = arith.addf %82, %86 : vector<1x256xf32>
    %88 = vector.extract_strided_slice %0 {offsets = [4, 0], sizes = [1, 256], strides = [1, 1]} : vector<6x256xf32> to vector<1x256xf32>
    %c4_33 = arith.constant 4 : index
    %c2_34 = arith.constant 2 : index
    %89 = memref.load %arg2[%c4_33, %c2_34] : memref<6x5xf32, #tpu.memory_space<smem>>
    %90 = vector.broadcast %89 : f32 to vector<1x256xf32>
    %91 = arith.mulf %88, %90 : vector<1x256xf32>
    %92 = arith.addf %87, %91 : vector<1x256xf32>
    %93 = vector.extract_strided_slice %0 {offsets = [5, 0], sizes = [1, 256], strides = [1, 1]} : vector<6x256xf32> to vector<1x256xf32>
    %c5_35 = arith.constant 5 : index
    %c2_36 = arith.constant 2 : index
    %94 = memref.load %arg2[%c5_35, %c2_36] : memref<6x5xf32, #tpu.memory_space<smem>>
    %95 = vector.broadcast %94 : f32 to vector<1x256xf32>
    %96 = arith.mulf %93, %95 : vector<1x256xf32>
    %97 = arith.addf %92, %96 : vector<1x256xf32>
    %c0_37 = arith.constant 0 : index
    %c2_38 = arith.constant 2 : index
    %98 = memref.load %arg3[%c0_37, %c2_38] : memref<1x5xf32, #tpu.memory_space<smem>>
    %99 = vector.broadcast %98 : f32 to vector<1x256xf32>
    %100 = arith.addf %97, %99 : vector<1x256xf32>
    %cst_39 = arith.constant 0.000000e+00 : f32
    %101 = vector.broadcast %cst_39 : f32 to vector<1x256xf32>
    %102 = arith.maximumf %100, %101 : vector<1x256xf32>
    %103 = vector.extract_strided_slice %0 {offsets = [0, 0], sizes = [1, 256], strides = [1, 1]} : vector<6x256xf32> to vector<1x256xf32>
    %c0_40 = arith.constant 0 : index
    %c3_41 = arith.constant 3 : index
    %104 = memref.load %arg2[%c0_40, %c3_41] : memref<6x5xf32, #tpu.memory_space<smem>>
    %105 = vector.broadcast %104 : f32 to vector<1x256xf32>
    %106 = arith.mulf %103, %105 : vector<1x256xf32>
    %107 = vector.extract_strided_slice %0 {offsets = [1, 0], sizes = [1, 256], strides = [1, 1]} : vector<6x256xf32> to vector<1x256xf32>
    %c1_42 = arith.constant 1 : index
    %c3_43 = arith.constant 3 : index
    %108 = memref.load %arg2[%c1_42, %c3_43] : memref<6x5xf32, #tpu.memory_space<smem>>
    %109 = vector.broadcast %108 : f32 to vector<1x256xf32>
    %110 = arith.mulf %107, %109 : vector<1x256xf32>
    %111 = arith.addf %106, %110 : vector<1x256xf32>
    %112 = vector.extract_strided_slice %0 {offsets = [2, 0], sizes = [1, 256], strides = [1, 1]} : vector<6x256xf32> to vector<1x256xf32>
    %c2_44 = arith.constant 2 : index
    %c3_45 = arith.constant 3 : index
    %113 = memref.load %arg2[%c2_44, %c3_45] : memref<6x5xf32, #tpu.memory_space<smem>>
    %114 = vector.broadcast %113 : f32 to vector<1x256xf32>
    %115 = arith.mulf %112, %114 : vector<1x256xf32>
    %116 = arith.addf %111, %115 : vector<1x256xf32>
    %117 = vector.extract_strided_slice %0 {offsets = [3, 0], sizes = [1, 256], strides = [1, 1]} : vector<6x256xf32> to vector<1x256xf32>
    %c3_46 = arith.constant 3 : index
    %c3_47 = arith.constant 3 : index
    %118 = memref.load %arg2[%c3_46, %c3_47] : memref<6x5xf32, #tpu.memory_space<smem>>
    %119 = vector.broadcast %118 : f32 to vector<1x256xf32>
    %120 = arith.mulf %117, %119 : vector<1x256xf32>
    %121 = arith.addf %116, %120 : vector<1x256xf32>
    %122 = vector.extract_strided_slice %0 {offsets = [4, 0], sizes = [1, 256], strides = [1, 1]} : vector<6x256xf32> to vector<1x256xf32>
    %c4_48 = arith.constant 4 : index
    %c3_49 = arith.constant 3 : index
    %123 = memref.load %arg2[%c4_48, %c3_49] : memref<6x5xf32, #tpu.memory_space<smem>>
    %124 = vector.broadcast %123 : f32 to vector<1x256xf32>
    %125 = arith.mulf %122, %124 : vector<1x256xf32>
    %126 = arith.addf %121, %125 : vector<1x256xf32>
    %127 = vector.extract_strided_slice %0 {offsets = [5, 0], sizes = [1, 256], strides = [1, 1]} : vector<6x256xf32> to vector<1x256xf32>
    %c5_50 = arith.constant 5 : index
    %c3_51 = arith.constant 3 : index
    %128 = memref.load %arg2[%c5_50, %c3_51] : memref<6x5xf32, #tpu.memory_space<smem>>
    %129 = vector.broadcast %128 : f32 to vector<1x256xf32>
    %130 = arith.mulf %127, %129 : vector<1x256xf32>
    %131 = arith.addf %126, %130 : vector<1x256xf32>
    %c0_52 = arith.constant 0 : index
    %c3_53 = arith.constant 3 : index
    %132 = memref.load %arg3[%c0_52, %c3_53] : memref<1x5xf32, #tpu.memory_space<smem>>
    %133 = vector.broadcast %132 : f32 to vector<1x256xf32>
    %134 = arith.addf %131, %133 : vector<1x256xf32>
    %cst_54 = arith.constant 0.000000e+00 : f32
    %135 = vector.broadcast %cst_54 : f32 to vector<1x256xf32>
    %136 = arith.maximumf %134, %135 : vector<1x256xf32>
    %137 = vector.extract_strided_slice %0 {offsets = [0, 0], sizes = [1, 256], strides = [1, 1]} : vector<6x256xf32> to vector<1x256xf32>
    %c0_55 = arith.constant 0 : index
    %c4_56 = arith.constant 4 : index
    %138 = memref.load %arg2[%c0_55, %c4_56] : memref<6x5xf32, #tpu.memory_space<smem>>
    %139 = vector.broadcast %138 : f32 to vector<1x256xf32>
    %140 = arith.mulf %137, %139 : vector<1x256xf32>
    %141 = vector.extract_strided_slice %0 {offsets = [1, 0], sizes = [1, 256], strides = [1, 1]} : vector<6x256xf32> to vector<1x256xf32>
    %c1_57 = arith.constant 1 : index
    %c4_58 = arith.constant 4 : index
    %142 = memref.load %arg2[%c1_57, %c4_58] : memref<6x5xf32, #tpu.memory_space<smem>>
    %143 = vector.broadcast %142 : f32 to vector<1x256xf32>
    %144 = arith.mulf %141, %143 : vector<1x256xf32>
    %145 = arith.addf %140, %144 : vector<1x256xf32>
    %146 = vector.extract_strided_slice %0 {offsets = [2, 0], sizes = [1, 256], strides = [1, 1]} : vector<6x256xf32> to vector<1x256xf32>
    %c2_59 = arith.constant 2 : index
    %c4_60 = arith.constant 4 : index
    %147 = memref.load %arg2[%c2_59, %c4_60] : memref<6x5xf32, #tpu.memory_space<smem>>
    %148 = vector.broadcast %147 : f32 to vector<1x256xf32>
    %149 = arith.mulf %146, %148 : vector<1x256xf32>
    %150 = arith.addf %145, %149 : vector<1x256xf32>
    %151 = vector.extract_strided_slice %0 {offsets = [3, 0], sizes = [1, 256], strides = [1, 1]} : vector<6x256xf32> to vector<1x256xf32>
    %c3_61 = arith.constant 3 : index
    %c4_62 = arith.constant 4 : index
    %152 = memref.load %arg2[%c3_61, %c4_62] : memref<6x5xf32, #tpu.memory_space<smem>>
    %153 = vector.broadcast %152 : f32 to vector<1x256xf32>
    %154 = arith.mulf %151, %153 : vector<1x256xf32>
    %155 = arith.addf %150, %154 : vector<1x256xf32>
    %156 = vector.extract_strided_slice %0 {offsets = [4, 0], sizes = [1, 256], strides = [1, 1]} : vector<6x256xf32> to vector<1x256xf32>
    %c4_63 = arith.constant 4 : index
    %c4_64 = arith.constant 4 : index
    %157 = memref.load %arg2[%c4_63, %c4_64] : memref<6x5xf32, #tpu.memory_space<smem>>
    %158 = vector.broadcast %157 : f32 to vector<1x256xf32>
    %159 = arith.mulf %156, %158 : vector<1x256xf32>
    %160 = arith.addf %155, %159 : vector<1x256xf32>
    %161 = vector.extract_strided_slice %0 {offsets = [5, 0], sizes = [1, 256], strides = [1, 1]} : vector<6x256xf32> to vector<1x256xf32>
    %c5_65 = arith.constant 5 : index
    %c4_66 = arith.constant 4 : index
    %162 = memref.load %arg2[%c5_65, %c4_66] : memref<6x5xf32, #tpu.memory_space<smem>>
    %163 = vector.broadcast %162 : f32 to vector<1x256xf32>
    %164 = arith.mulf %161, %163 : vector<1x256xf32>
    %165 = arith.addf %160, %164 : vector<1x256xf32>
    %c0_67 = arith.constant 0 : index
    %c4_68 = arith.constant 4 : index
    %166 = memref.load %arg3[%c0_67, %c4_68] : memref<1x5xf32, #tpu.memory_space<smem>>
    %167 = vector.broadcast %166 : f32 to vector<1x256xf32>
    %168 = arith.addf %165, %167 : vector<1x256xf32>
    %cst_69 = arith.constant 0.000000e+00 : f32
    %169 = vector.broadcast %cst_69 : f32 to vector<1x256xf32>
    %170 = arith.maximumf %168, %169 : vector<1x256xf32>
    %c0_70 = arith.constant 0 : index
    %c0_71 = arith.constant 0 : index
    %171 = memref.load %arg4[%c0_70, %c0_71] : memref<5x3xf32, #tpu.memory_space<smem>>
    %172 = vector.broadcast %171 : f32 to vector<1x256xf32>
    %173 = arith.mulf %34, %172 : vector<1x256xf32>
    %c1_72 = arith.constant 1 : index
    %c0_73 = arith.constant 0 : index
    %174 = memref.load %arg4[%c1_72, %c0_73] : memref<5x3xf32, #tpu.memory_space<smem>>
    %175 = vector.broadcast %174 : f32 to vector<1x256xf32>
    %176 = arith.mulf %68, %175 : vector<1x256xf32>
    %177 = arith.addf %173, %176 : vector<1x256xf32>
    %c2_74 = arith.constant 2 : index
    %c0_75 = arith.constant 0 : index
    %178 = memref.load %arg4[%c2_74, %c0_75] : memref<5x3xf32, #tpu.memory_space<smem>>
    %179 = vector.broadcast %178 : f32 to vector<1x256xf32>
    %180 = arith.mulf %102, %179 : vector<1x256xf32>
    %181 = arith.addf %177, %180 : vector<1x256xf32>
    %c3_76 = arith.constant 3 : index
    %c0_77 = arith.constant 0 : index
    %182 = memref.load %arg4[%c3_76, %c0_77] : memref<5x3xf32, #tpu.memory_space<smem>>
    %183 = vector.broadcast %182 : f32 to vector<1x256xf32>
    %184 = arith.mulf %136, %183 : vector<1x256xf32>
    %185 = arith.addf %181, %184 : vector<1x256xf32>
    %c4_78 = arith.constant 4 : index
    %c0_79 = arith.constant 0 : index
    %186 = memref.load %arg4[%c4_78, %c0_79] : memref<5x3xf32, #tpu.memory_space<smem>>
    %187 = vector.broadcast %186 : f32 to vector<1x256xf32>
    %188 = arith.mulf %170, %187 : vector<1x256xf32>
    %189 = arith.addf %185, %188 : vector<1x256xf32>
    %c0_80 = arith.constant 0 : index
    %c0_81 = arith.constant 0 : index
    %190 = memref.load %arg5[%c0_80, %c0_81] : memref<1x3xf32, #tpu.memory_space<smem>>
    %191 = vector.broadcast %190 : f32 to vector<1x256xf32>
    %192 = arith.addf %189, %191 : vector<1x256xf32>
    %cst_82 = arith.constant 0.000000e+00 : f32
    %193 = vector.broadcast %cst_82 : f32 to vector<1x256xf32>
    %194 = arith.maximumf %192, %193 : vector<1x256xf32>
    %c0_83 = arith.constant 0 : index
    %c1_84 = arith.constant 1 : index
    %195 = memref.load %arg4[%c0_83, %c1_84] : memref<5x3xf32, #tpu.memory_space<smem>>
    %196 = vector.broadcast %195 : f32 to vector<1x256xf32>
    %197 = arith.mulf %34, %196 : vector<1x256xf32>
    %c1_85 = arith.constant 1 : index
    %c1_86 = arith.constant 1 : index
    %198 = memref.load %arg4[%c1_85, %c1_86] : memref<5x3xf32, #tpu.memory_space<smem>>
    %199 = vector.broadcast %198 : f32 to vector<1x256xf32>
    %200 = arith.mulf %68, %199 : vector<1x256xf32>
    %201 = arith.addf %197, %200 : vector<1x256xf32>
    %c2_87 = arith.constant 2 : index
    %c1_88 = arith.constant 1 : index
    %202 = memref.load %arg4[%c2_87, %c1_88] : memref<5x3xf32, #tpu.memory_space<smem>>
    %203 = vector.broadcast %202 : f32 to vector<1x256xf32>
    %204 = arith.mulf %102, %203 : vector<1x256xf32>
    %205 = arith.addf %201, %204 : vector<1x256xf32>
    %c3_89 = arith.constant 3 : index
    %c1_90 = arith.constant 1 : index
    %206 = memref.load %arg4[%c3_89, %c1_90] : memref<5x3xf32, #tpu.memory_space<smem>>
    %207 = vector.broadcast %206 : f32 to vector<1x256xf32>
    %208 = arith.mulf %136, %207 : vector<1x256xf32>
    %209 = arith.addf %205, %208 : vector<1x256xf32>
    %c4_91 = arith.constant 4 : index
    %c1_92 = arith.constant 1 : index
    %210 = memref.load %arg4[%c4_91, %c1_92] : memref<5x3xf32, #tpu.memory_space<smem>>
    %211 = vector.broadcast %210 : f32 to vector<1x256xf32>
    %212 = arith.mulf %170, %211 : vector<1x256xf32>
    %213 = arith.addf %209, %212 : vector<1x256xf32>
    %c0_93 = arith.constant 0 : index
    %c1_94 = arith.constant 1 : index
    %214 = memref.load %arg5[%c0_93, %c1_94] : memref<1x3xf32, #tpu.memory_space<smem>>
    %215 = vector.broadcast %214 : f32 to vector<1x256xf32>
    %216 = arith.addf %213, %215 : vector<1x256xf32>
    %cst_95 = arith.constant 0.000000e+00 : f32
    %217 = vector.broadcast %cst_95 : f32 to vector<1x256xf32>
    %218 = arith.maximumf %216, %217 : vector<1x256xf32>
    %c0_96 = arith.constant 0 : index
    %c2_97 = arith.constant 2 : index
    %219 = memref.load %arg4[%c0_96, %c2_97] : memref<5x3xf32, #tpu.memory_space<smem>>
    %220 = vector.broadcast %219 : f32 to vector<1x256xf32>
    %221 = arith.mulf %34, %220 : vector<1x256xf32>
    %c1_98 = arith.constant 1 : index
    %c2_99 = arith.constant 2 : index
    %222 = memref.load %arg4[%c1_98, %c2_99] : memref<5x3xf32, #tpu.memory_space<smem>>
    %223 = vector.broadcast %222 : f32 to vector<1x256xf32>
    %224 = arith.mulf %68, %223 : vector<1x256xf32>
    %225 = arith.addf %221, %224 : vector<1x256xf32>
    %c2_100 = arith.constant 2 : index
    %c2_101 = arith.constant 2 : index
    %226 = memref.load %arg4[%c2_100, %c2_101] : memref<5x3xf32, #tpu.memory_space<smem>>
    %227 = vector.broadcast %226 : f32 to vector<1x256xf32>
    %228 = arith.mulf %102, %227 : vector<1x256xf32>
    %229 = arith.addf %225, %228 : vector<1x256xf32>
    %c3_102 = arith.constant 3 : index
    %c2_103 = arith.constant 2 : index
    %230 = memref.load %arg4[%c3_102, %c2_103] : memref<5x3xf32, #tpu.memory_space<smem>>
    %231 = vector.broadcast %230 : f32 to vector<1x256xf32>
    %232 = arith.mulf %136, %231 : vector<1x256xf32>
    %233 = arith.addf %229, %232 : vector<1x256xf32>
    %c4_104 = arith.constant 4 : index
    %c2_105 = arith.constant 2 : index
    %234 = memref.load %arg4[%c4_104, %c2_105] : memref<5x3xf32, #tpu.memory_space<smem>>
    %235 = vector.broadcast %234 : f32 to vector<1x256xf32>
    %236 = arith.mulf %170, %235 : vector<1x256xf32>
    %237 = arith.addf %233, %236 : vector<1x256xf32>
    %c0_106 = arith.constant 0 : index
    %c2_107 = arith.constant 2 : index
    %238 = memref.load %arg5[%c0_106, %c2_107] : memref<1x3xf32, #tpu.memory_space<smem>>
    %239 = vector.broadcast %238 : f32 to vector<1x256xf32>
    %240 = arith.addf %237, %239 : vector<1x256xf32>
    %cst_108 = arith.constant 0.000000e+00 : f32
    %241 = vector.broadcast %cst_108 : f32 to vector<1x256xf32>
    %242 = arith.maximumf %240, %241 : vector<1x256xf32>
    %c0_109 = arith.constant 0 : index
    %c0_110 = arith.constant 0 : index
    %243 = memref.load %arg6[%c0_109, %c0_110] : memref<3x1xf32, #tpu.memory_space<smem>>
    %244 = vector.broadcast %243 : f32 to vector<1x256xf32>
    %245 = arith.mulf %194, %244 : vector<1x256xf32>
    %c1_111 = arith.constant 1 : index
    %c0_112 = arith.constant 0 : index
    %246 = memref.load %arg6[%c1_111, %c0_112] : memref<3x1xf32, #tpu.memory_space<smem>>
    %247 = vector.broadcast %246 : f32 to vector<1x256xf32>
    %248 = arith.mulf %218, %247 : vector<1x256xf32>
    %249 = arith.addf %245, %248 : vector<1x256xf32>
    %c2_113 = arith.constant 2 : index
    %c0_114 = arith.constant 0 : index
    %250 = memref.load %arg6[%c2_113, %c0_114] : memref<3x1xf32, #tpu.memory_space<smem>>
    %251 = vector.broadcast %250 : f32 to vector<1x256xf32>
    %252 = arith.mulf %242, %251 : vector<1x256xf32>
    %253 = arith.addf %249, %252 : vector<1x256xf32>
    %c0_115 = arith.constant 0 : index
    %c0_116 = arith.constant 0 : index
    %254 = memref.load %arg7[%c0_115, %c0_116] : memref<1x1xf32, #tpu.memory_space<smem>>
    %255 = vector.broadcast %254 : f32 to vector<1x256xf32>
    %256 = arith.addf %253, %255 : vector<1x256xf32>
    %cst_117 = arith.constant 0.000000e+00 : f32
    %257 = vector.broadcast %cst_117 : f32 to vector<1x256xf32>
    %258 = arith.subf %257, %256 : vector<1x256xf32>
    %259 = math.exp %258 : vector<1x256xf32>
    %cst_118 = arith.constant 1.000000e+00 : f32
    %260 = vector.broadcast %cst_118 : f32 to vector<1x256xf32>
    %261 = arith.addf %260, %259 : vector<1x256xf32>
    %cst_119 = arith.constant 1.000000e+00 : f32
    %262 = vector.broadcast %cst_119 : f32 to vector<1x256xf32>
    %263 = arith.divf %262, %261 : vector<1x256xf32>
    %c0_120 = arith.constant 0 : index
    %c0_121 = arith.constant 0 : index
    %264 = vector.load %arg8[%c0_120, %c0_121] : memref<1x256xf32, #tpu.memory_space<vmem>>, vector<1x256xf32>
    tpu.vector_store %arg8[%c0_120, %c0_121], %263 {strides = array<i32>} : memref<1x256xf32, #tpu.memory_space<vmem>>, vector<1x256xf32>,
    return
  }
  func.func @transform_0(%arg0: i32) -> (i32, i32) {
    %c0_i32 = arith.constant 0 : i32
    %c0_i32_0 = arith.constant 0 : i32
    return %c0_i32, %arg0 : i32, i32
  }
  func.func @transform_1(%arg0: i32) -> (i32, i32) {
    %c0_i32 = arith.constant 0 : i32
    %c0_i32_0 = arith.constant 0 : i32
    %c0_i32_1 = arith.constant 0 : i32
    return %c0_i32, %c0_i32_0 : i32, i32
  }
  func.func @transform_2(%arg0: i32) -> (i32, i32) {
    %c0_i32 = arith.constant 0 : i32
    %c0_i32_0 = arith.constant 0 : i32
    %c0_i32_1 = arith.constant 0 : i32
    return %c0_i32, %c0_i32_0 : i32, i32
  }
  func.func @transform_3(%arg0: i32) -> (i32, i32) {
    %c0_i32 = arith.constant 0 : i32
    %c0_i32_0 = arith.constant 0 : i32
    %c0_i32_1 = arith.constant 0 : i32
    return %c0_i32, %c0_i32_0 : i32, i32
  }
  func.func @transform_4(%arg0: i32) -> (i32, i32) {
    %c0_i32 = arith.constant 0 : i32
    %c0_i32_0 = arith.constant 0 : i32
    %c0_i32_1 = arith.constant 0 : i32
    return %c0_i32, %c0_i32_0 : i32, i32
  }
  func.func @transform_5(%arg0: i32) -> (i32, i32) {
    %c0_i32 = arith.constant 0 : i32
    %c0_i32_0 = arith.constant 0 : i32
    %c0_i32_1 = arith.constant 0 : i32
    return %c0_i32, %c0_i32_0 : i32, i32
  }
  func.func @transform_6(%arg0: i32) -> (i32, i32) {
    %c0_i32 = arith.constant 0 : i32
    %c0_i32_0 = arith.constant 0 : i32
    %c0_i32_1 = arith.constant 0 : i32
    return %c0_i32, %c0_i32_0 : i32, i32
  }
  func.func @transform_7(%arg0: i32) -> (i32, i32) {
    %c0_i32 = arith.constant 0 : i32
    %c0_i32_0 = arith.constant 0 : i32
    return %c0_i32, %arg0 : i32, i32
  }
}

</mosaic_0001>

<llo_original>
// kernel: net_forward.1
$region0: #{net_forward.1}
  #allocation0 [shape = 'u32[]', space=smem, size = 0x4, offset = 0x4, fixed_abs, tag = 'smem constant byte address 0x4 - core index']
  #allocation1 [shape = 'u32[144,128]{1,0:T(1,128)}', space=vmem, size = 0x12000, scoped, tag = 'internal scratch']
  #allocation2 [shape = 'f32[1,1]{1,0:T(1,128)S(6)}', space=smem, size = 0x200, scoped, tag = 'scoped memory for net_forward.1']
  %s0 = inlined_call_operand.vmem [shape: f32[6,1024], index: 0, kind: input, shape index: {}]
  %s1 = inlined_call_operand.vmem [shape: f32[6,5], index: 1, kind: input, shape index: {}]
  %s2 = inlined_call_operand.vmem [shape: f32[1,5], index: 2, kind: input, shape index: {}]
  %s3 = inlined_call_operand.vmem [shape: f32[5,3], index: 3, kind: input, shape index: {}]
  %s4 = inlined_call_operand.vmem [shape: f32[1,3], index: 4, kind: input, shape index: {}]
  %s5 = inlined_call_operand.vmem [shape: f32[3,1], index: 5, kind: input, shape index: {}]
  %s6 = inlined_call_operand.<no memory space> [shape: f32[1,1], index: 6, kind: input, shape index: {}]
  %s7 = inlined_call_operand.vmem [shape: f32[1,1024], index: 7, kind: output, shape index: {}]
  %s8 = sld [smem:[#allocation0]]
  $region81: #{net_forward.1} parent=0
    _
  %s10 = ssub.s32 1, %s8
  %s11 = scalar_select 0, %s10, %s8
  %12 = sst [smem:[#allocation2]] %s6
  $region1: #{net_forward.1} parent=0
    #allocation3 [shape = 'u8[4096]{0}', space=smem, size = 0x1000, scoped, tag = 'input window, operand 1, single buffered']
    #allocation4 [shape = 's32[2]{0}', space=sflag, size = 0x8, scoped, tag = 'scoped memory for net_forward.1']
    #allocation5 [shape = 'u8[512]{0}', space=smem, size = 0x200, scoped, tag = 'input window, operand 2, single buffered']
    #allocation6 [shape = 's32[1]{0}', space=sflag, size = 0x4, scoped, tag = 'scoped memory for net_forward.1']
    #allocation7 [shape = 'u8[4096]{0}', space=smem, size = 0x1000, scoped, tag = 'input window, operand 3, single buffered']
    #allocation8 [shape = 'u8[512]{0}', space=smem, size = 0x200, scoped, tag = 'input window, operand 4, single buffered']
    #allocation9 [shape = 's32[1]{0}', space=sflag, size = 0x4, scoped, tag = 'scoped memory for net_forward.1']
    #allocation10 [shape = 'u8[2048]{0}', space=smem, size = 0x800, scoped, tag = 'input window, operand 5, single buffered']
    %13 = vsyncpa [#allocation4], 0
    %14 = vsyncpa [#allocation6], 0
    %15 = vsyncpa [#allocation9], 0
    loop: start=0, step=1, limit=6
    $region2: #{net_forward.1} parent=1 // loop_pre_header
      _
    $region3: #{net_forward.1} parent=1 // loop_header
      %s17 = sphi 0, %s21
      %p18 = scmp.ge.s32.totalorder %s17, 6
      %s27 = sphi 0, %s29
      %s30 = sphi 0, %s27
      %s31 = sphi 0, %s30
      %s47 = sphi 0, %s31
      %s51 = sphi 0, %s51
      %s53 = sphi 0, %s51
      %s54 = sphi 0, %s53
      %s68 = sphi 0, %s54
      %s72 = sphi 0, %s72
      %s74 = sphi 0, %s72
      %s75 = sphi 0, %s74
      %s89 = sphi 0, %s75
      %s93 = sphi 0, %s93
      %s95 = sphi 0, %s93
      %s96 = sphi 0, %s95
      %s110 = sphi 0, %s96
      %s114 = sphi 0, %s114
      %s116 = sphi 0, %s114
      %s117 = sphi 0, %s116
      %s131 = sphi 0, %s117
      %s135 = sphi 0, %s135
      %s137 = sphi 0, %s135
      %s138 = sphi 0, %s137
      %s152 = sphi 0, %s138
      %s156 = sphi 0, %s156
      %s158 = sphi 0, %s156
      %s159 = sphi 0, %s158
      %s173 = sphi 0, %s159
      %s179 = sphi 0, %s181
      %s182 = sphi 0, %s179
      %s183 = sphi 0, %s182
      %s199 = sphi 0, %s183
    $region4: #{net_forward.1} parent=1 // loop_header_branch
      %20 = sbr.rel (%p18) target = $region8
    $region5: #{net_forward.1} parent=1 // loop_body
      %s22 = ssub.s32 %s17, 1
      %s23 = ssub.s32 %s17, 2
      %s24 = sadd.s32 %s17, 1
      %s25 = ssub.s32 %s17, %s24
      %p26 = scmp.eq.s32.totalorder %s25, 0
      %s28 = sadd.s32 %s27, 1
      %s29 = scalar_select %p26, %s27, %s28
      %p32 = pneg %p26
      %p33 = scmp.eq.s32.totalorder %s17, 3
      %p34 = por %p32, %p33
      %p35 = scmp.ne.s32.totalorder %s27, %s30
      %p36 = scmp.eq.s32.totalorder %s17, 0
      %p37 = por %p35, %p36
      %p38 = scmp.ne.s32.totalorder %s27, %s30
      %p39 = scmp.eq.s32.totalorder %s22, 3
      %p40 = por %p38, %p39
      %p41 = scmp.ne.s32.totalorder %s30, %s31
      %p42 = scmp.eq.s32.totalorder %s22, 0
      %p43 = por %p41, %p42
      %p44 = scmp.ne.s32.totalorder %s30, %s31
      %p45 = scmp.eq.s32.totalorder %s23, 3
      %p46 = por %p44, %p45
      %p48 = scmp.ne.s32.totalorder %s31, %s47
      %p49 = scmp.eq.s32.totalorder %s23, 0
      %p50 = por %p48, %p49
      %s52 = sadd.s32 %s51, 1
      %p55 = scmp.eq.s32.totalorder %s17, 3
      %p56 = scmp.ne.s32.totalorder %s51, %s53
      %p57 = scmp.eq.s32.totalorder %s17, 0
      %p58 = por %p56, %p57
      %p59 = scmp.ne.s32.totalorder %s51, %s53
      %p60 = scmp.eq.s32.totalorder %s22, 3
      %p61 = por %p59, %p60
      %p62 = scmp.ne.s32.totalorder %s53, %s54
      %p63 = scmp.eq.s32.totalorder %s22, 0
      %p64 = por %p62, %p63
      %p65 = scmp.ne.s32.totalorder %s53, %s54
      %p66 = scmp.eq.s32.totalorder %s23, 3
      %p67 = por %p65, %p66
      %p69 = scmp.ne.s32.totalorder %s54, %s68
      %p70 = scmp.eq.s32.totalorder %s23, 0
      %p71 = por %p69, %p70
      %s73 = sadd.s32 %s72, 1
      %p76 = scmp.eq.s32.totalorder %s17, 3
      %p77 = scmp.ne.s32.totalorder %s72, %s74
      %p78 = scmp.eq.s32.totalorder %s17, 0
      %p79 = por %p77, %p78
      %p80 = scmp.ne.s32.totalorder %s72, %s74
      %p81 = scmp.eq.s32.totalorder %s22, 3
      %p82 = por %p80, %p81
      %p83 = scmp.ne.s32.totalorder %s74, %s75
      %p84 = scmp.eq.s32.totalorder %s22, 0
      %p85 = por %p83, %p84
      %p86 = scmp.ne.s32.totalorder %s74, %s75
      %p87 = scmp.eq.s32.totalorder %s23, 3
      %p88 = por %p86, %p87
      %p90 = scmp.ne.s32.totalorder %s75, %s89
      %p91 = scmp.eq.s32.totalorder %s23, 0
      %p92 = por %p90, %p91
      %s94 = sadd.s32 %s93, 1
      %p97 = scmp.eq.s32.totalorder %s17, 3
      %p98 = scmp.ne.s32.totalorder %s93, %s95
      %p99 = scmp.eq.s32.totalorder %s17, 0
      %p100 = por %p98, %p99
      %p101 = scmp.ne.s32.totalorder %s93, %s95
      %p102 = scmp.eq.s32.totalorder %s22, 3
      %p103 = por %p101, %p102
      %p104 = scmp.ne.s32.totalorder %s95, %s96
      %p105 = scmp.eq.s32.totalorder %s22, 0
      %p106 = por %p104, %p105
      %p107 = scmp.ne.s32.totalorder %s95, %s96
      %p108 = scmp.eq.s32.totalorder %s23, 3
      %p109 = por %p107, %p108
      %p111 = scmp.ne.s32.totalorder %s96, %s110
      %p112 = scmp.eq.s32.totalorder %s23, 0
      %p113 = por %p111, %p112
      %s115 = sadd.s32 %s114, 1
      %p118 = scmp.eq.s32.totalorder %s17, 3
      %p119 = scmp.ne.s32.totalorder %s114, %s116
      %p120 = scmp.eq.s32.totalorder %s17, 0
      %p121 = por %p119, %p120
      %p122 = scmp.ne.s32.totalorder %s114, %s116
      %p123 = scmp.eq.s32.totalorder %s22, 3
      %p124 = por %p122, %p123
      %p125 = scmp.ne.s32.totalorder %s116, %s117
      %p126 = scmp.eq.s32.totalorder %s22, 0
      %p127 = por %p125, %p126
      %p128 = scmp.ne.s32.totalorder %s116, %s117
      %p129 = scmp.eq.s32.totalorder %s23, 3
      %p130 = por %p128, %p129
      %p132 = scmp.ne.s32.totalorder %s117, %s131
      %p133 = scmp.eq.s32.totalorder %s23, 0
      %p134 = por %p132, %p133
      %s136 = sadd.s32 %s135, 1
      %p139 = scmp.eq.s32.totalorder %s17, 3
      %p140 = scmp.ne.s32.totalorder %s135, %s137
      %p141 = scmp.eq.s32.totalorder %s17, 0
      %p142 = por %p140, %p141
      %p143 = scmp.ne.s32.totalorder %s135, %s137
      %p144 = scmp.eq.s32.totalorder %s22, 3
      %p145 = por %p143, %p144
      %p146 = scmp.ne.s32.totalorder %s137, %s138
      %p147 = scmp.eq.s32.totalorder %s22, 0
      %p148 = por %p146, %p147
      %p149 = scmp.ne.s32.totalorder %s137, %s138
      %p150 = scmp.eq.s32.totalorder %s23, 3
      %p151 = por %p149, %p150
      %p153 = scmp.ne.s32.totalorder %s138, %s152
      %p154 = scmp.eq.s32.totalorder %s23, 0
      %p155 = por %p153, %p154
      %s157 = sadd.s32 %s156, 1
      %p160 = scmp.eq.s32.totalorder %s17, 3
      %p161 = scmp.ne.s32.totalorder %s156, %s158
      %p162 = scmp.eq.s32.totalorder %s17, 0
      %p163 = por %p161, %p162
      %p164 = scmp.ne.s32.totalorder %s156, %s158
      %p165 = scmp.eq.s32.totalorder %s22, 3
      %p166 = por %p164, %p165
      %p167 = scmp.ne.s32.totalorder %s158, %s159
      %p168 = scmp.eq.s32.totalorder %s22, 0
      %p169 = por %p167, %p168
      %p170 = scmp.ne.s32.totalorder %s158, %s159
      %p171 = scmp.eq.s32.totalorder %s23, 3
      %p172 = por %p170, %p171
      %p174 = scmp.ne.s32.totalorder %s159, %s173
      %p175 = scmp.eq.s32.totalorder %s23, 0
      %p176 = por %p174, %p175
      %s177 = ssub.s32 %s17, %s24
      %p178 = scmp.eq.s32.totalorder %s177, 0
      %s180 = sadd.s32 %s179, 1
      %s181 = scalar_select %p178, %s179, %s180
      %p184 = pneg %p178
      %p185 = scmp.eq.s32.totalorder %s17, 3
      %p186 = por %p184, %p185
      %p187 = scmp.ne.s32.totalorder %s179, %s182
      %p188 = scmp.eq.s32.totalorder %s17, 0
      %p189 = por %p187, %p188
      %p190 = scmp.ne.s32.totalorder %s179, %s182
      %p191 = scmp.eq.s32.totalorder %s22, 3
      %p192 = por %p190, %p191
      %p193 = scmp.ne.s32.totalorder %s182, %s183
      %p194 = scmp.eq.s32.totalorder %s22, 0
      %p195 = por %p193, %p194
      %p196 = scmp.ne.s32.totalorder %s182, %s183
      %p197 = scmp.eq.s32.totalorder %s23, 3
      %p198 = por %p196, %p197
      %p200 = scmp.ne.s32.totalorder %s183, %s199
      %p201 = scmp.eq.s32.totalorder %s23, 0
      %p202 = por %p200, %p201
      %p203 = scmp.le.s32.totalorder 1, %s17
      %p204 = scmp.lt.s32.totalorder %s17, 5
      %p205 = pnand %p203, %p204
      %p206 = pneg %p205
      // Predicated region
      $region9: #{net_forward.1} parent=5 // pred_check
        _
      $region10: #{net_forward.1} parent=5 // pred_check_branch
        %208 = sbr.rel (%p205) target = $region12
      $region11: #{net_forward.1} parent=5 // pred_region
        %s209 = ssub.s32 %s17, 1
        // Predicated region
        $region13: #{net_forward.1} parent=11 // pred_check
          %p210 = pneg %p64
        $region14: #{net_forward.1} parent=11 // pred_check_branch
          %212 = sbr.rel (%p210) target = $region16
        $region15: #{net_forward.1} parent=11 // pred_region
          %s214 = ssub.s32 128, 128
          %215 = vsyncadd [#allocation4], %s214
          %s217 = sshll.u32 %s1, 4
          %s218 = int_to_ptr.vmem [resolvable:$true] %s217
          %220 = dma.vmem_to_smem %s218, 128, [#allocation3], [#allocation4]
        $region16: #{net_forward.1} parent=11 // pred_fallthru
          _
        // Predicated region
        $region17: #{net_forward.1} parent=11 // pred_check
          %p221 = pneg %p85
        $region18: #{net_forward.1} parent=11 // pred_check_branch
          %223 = sbr.rel (%p221) target = $region20
        $region19: #{net_forward.1} parent=11 // pred_region
          %s225 = ssub.s32 16, 16
          %226 = vsyncadd [#allocation6], %s225
          %s228 = sshll.u32 %s2, 4
          %s229 = int_to_ptr.vmem [resolvable:$true] %s228
          %231 = dma.vmem_to_smem %s229, 16, [#allocation5], [#allocation6]
        $region20: #{net_forward.1} parent=11 // pred_fallthru
          _
        // Predicated region
        $region21: #{net_forward.1} parent=11 // pred_check
          %p232 = pneg %p106
        $region22: #{net_forward.1} parent=11 // pred_check_branch
          %234 = sbr.rel (%p232) target = $region24
        $region23: #{net_forward.1} parent=11 // pred_region
          %s236 = ssub.s32 128, 128
          %237 = vsyncadd [#allocation6], %s236
          %s239 = sshll.u32 %s3, 4
          %s240 = int_to_ptr.vmem [resolvable:$true] %s239
          %242 = dma.vmem_to_smem %s240, 128, [#allocation7], [#allocation6]
        $region24: #{net_forward.1} parent=11 // pred_fallthru
          _
        // Predicated region
        $region25: #{net_forward.1} parent=11 // pred_check
          %p243 = pneg %p127
        $region26: #{net_forward.1} parent=11 // pred_check_branch
          %245 = sbr.rel (%p243) target = $region28
        $region27: #{net_forward.1} parent=11 // pred_region
          %s247 = ssub.s32 16, 16
          %248 = vsyncadd [#allocation9], %s247
          %s250 = sshll.u32 %s4, 4
          %s251 = int_to_ptr.vmem [resolvable:$true] %s250
          %253 = dma.vmem_to_smem %s251, 16, [#allocation8], [#allocation9]
        $region28: #{net_forward.1} parent=11 // pred_fallthru
          _
        // Predicated region
        $region29: #{net_forward.1} parent=11 // pred_check
          %p254 = pneg %p148
        $region30: #{net_forward.1} parent=11 // pred_check_branch
          %256 = sbr.rel (%p254) target = $region32
        $region31: #{net_forward.1} parent=11 // pred_region
          %s258 = ssub.s32 64, 64
          %259 = vsyncadd [#allocation9], %s258
          %s261 = sshll.u32 %s5, 4
          %s262 = int_to_ptr.vmem [resolvable:$true] %s261
          %264 = dma.vmem_to_smem %s262, 64, [#allocation10], [#allocation9]
        $region32: #{net_forward.1} parent=11 // pred_fallthru
          _
        // Predicated region
        $region33: #{net_forward.1} parent=11 // pred_check
          %p265 = pneg %p169
        $region34: #{net_forward.1} parent=11 // pred_check_branch
          %267 = sbr.rel (%p265) target = $region36
        $region35: #{net_forward.1} parent=11 // pred_region
          _
        $region36: #{net_forward.1} parent=11 // pred_fallthru
          _
      $region12: #{net_forward.1} parent=5 // pred_fallthru
        _
      %p268 = scmp.lt.s32.totalorder %s17, 4
      // Predicated region
      $region37: #{net_forward.1} parent=5 // pred_check
        %p269 = pneg %p268
      $region38: #{net_forward.1} parent=5 // pred_check_branch
        %271 = sbr.rel (%p269) target = $region40
      $region39: #{net_forward.1} parent=5 // pred_region
        // Predicated region
        $region41: #{net_forward.1} parent=39 // pred_check
          %p272 = pneg %p37
        $region42: #{net_forward.1} parent=39 // pred_check_branch
          %274 = sbr.rel (%p272) target = $region44
        $region43: #{net_forward.1} parent=39 // pred_region
          %s275 = smul.u32 2, %s17
          %p276 = scmp.lt.s32.totalorder %s275, 7
          %s277 = scalar_select %p276, %s275, 7
          %s278 = smul.addr %s277, 8
          %s279 = scalar_lea.vmem %s0, %s278
          %s280 = smul.u32 2, %s17
        $region44: #{net_forward.1} parent=39 // pred_fallthru
          _
      $region40: #{net_forward.1} parent=5 // pred_fallthru
        _
      %p281 = scmp.le.s32.totalorder 1, %s17
      %p282 = scmp.lt.s32.totalorder %s17, 5
      %p283 = pnand %p281, %p282
      %p284 = pneg %p283
      // Predicated region
      $region45: #{net_forward.1} parent=5 // pred_check
        _
      $region46: #{net_forward.1} parent=5 // pred_check_branch
        %286 = sbr.rel (%p283) target = $region48
      $region47: #{net_forward.1} parent=5 // pred_region
        %s287 = ssub.s32 %s17, 1
        // Predicated region
        $region49: #{net_forward.1} parent=47 // pred_check
          %p288 = pneg %p64
        $region50: #{net_forward.1} parent=47 // pred_check_branch
          %290 = sbr.rel (%p288) target = $region52
        $region51: #{net_forward.1} parent=47 // pred_region
          %291 = dma.done [#allocation4], 128
        $region52: #{net_forward.1} parent=47 // pred_fallthru
          _
        // Predicated region
        $region53: #{net_forward.1} parent=47 // pred_check
          %p292 = pneg %p85
        $region54: #{net_forward.1} parent=47 // pred_check_branch
          %294 = sbr.rel (%p292) target = $region56
        $region55: #{net_forward.1} parent=47 // pred_region
          %295 = dma.done [#allocation6], 16
        $region56: #{net_forward.1} parent=47 // pred_fallthru
          _
        // Predicated region
        $region57: #{net_forward.1} parent=47 // pred_check
          %p296 = pneg %p106
        $region58: #{net_forward.1} parent=47 // pred_check_branch
          %298 = sbr.rel (%p296) target = $region60
        $region59: #{net_forward.1} parent=47 // pred_region
          %299 = dma.done [#allocation6], 128
        $region60: #{net_forward.1} parent=47 // pred_fallthru
          _
        // Predicated region
        $region61: #{net_forward.1} parent=47 // pred_check
          %p300 = pneg %p127
        $region62: #{net_forward.1} parent=47 // pred_check_branch
          %302 = sbr.rel (%p300) target = $region64
        $region63: #{net_forward.1} parent=47 // pred_region
          %303 = dma.done [#allocation9], 16
        $region64: #{net_forward.1} parent=47 // pred_fallthru
          _
        // Predicated region
        $region65: #{net_forward.1} parent=47 // pred_check
          %p304 = pneg %p148
        $region66: #{net_forward.1} parent=47 // pred_check_branch
          %306 = sbr.rel (%p304) target = $region68
        $region67: #{net_forward.1} parent=47 // pred_region
          %307 = dma.done [#allocation9], 64
        $region68: #{net_forward.1} parent=47 // pred_fallthru
          _
        %308 = sfence
        %s309 = smul.u32 2, %s22
        %p310 = scmp.lt.s32.totalorder %s309, 7
        %s311 = scalar_select %p310, %s309, 7
        %s312 = smul.addr %s311, 8
        %s313 = scalar_lea.vmem %s0, %s312
        %p314 = pneg %p43
        %p315 = pneg %p40
        %p316 = pneg %p64
        %p317 = pneg %p61
        %p318 = pneg %p85
        %p319 = pneg %p82
        %p320 = pneg %p106
        %p321 = pneg %p103
        %p322 = pneg %p127
        %p323 = pneg %p124
        %p324 = pneg %p148
        %p325 = pneg %p145
        %p326 = pneg %p169
        %p327 = pneg %p166
        %p328 = pneg %p195
        %p329 = pneg %p192
        %s330 = smul.u32 2, %s22
        %p331 = scmp.lt.s32.totalorder %s330, 7
        %s332 = scalar_select %p331, %s330, 7
        %s333 = scalar_lea.vmem %s7, %s332
        %s334 = smul.u32 2, %s22
        %p335 = scmp.lt.s32.totalorder %s334, 7
        %s336 = scalar_select %p335, %s334, 7
        %s337 = smul.addr %s336, 8
        %s338 = scalar_lea.vmem %s0, %s337
        %s339 = smul.u32 2, %s22
        %s340 = smul.u32 2, %s22
        %p341 = scmp.lt.s32.totalorder %s340, 7
        %s342 = scalar_select %p341, %s340, 7
        %s343 = scalar_lea.vmem %s7, %s342
        %s344 = smul.u32 2, %s22
        %v345 = vld [vmem:[%s338] sm:$0x3f]
        %v346 = vld [vmem:[%s338 + $0x8] sm:$0x3f]
        %s347 = sld [smem:[#allocation3]]
        %v348 = vstv %s347
        %v349 = vmul.f32 %v345, %v348
        %v350 = vmul.f32 %v346, %v348
        %s351 = sld [smem:[#allocation3 + $0x80]]
        %v352 = vstv %s351
        %v353 = vmul.f32 %v345, %v352
        %v354 = vmul.f32 %v346, %v352
        %v357 = vrot.slane %v353, 1
        %v358 = vrot.slane %v354, 1
        %v361 = vadd.f32 %v349, %v357
        %v362 = vadd.f32 %v350, %v358
        %s363 = sld [smem:[#allocation3 + $0x100]]
        %v364 = vstv %s363
        %v365 = vmul.f32 %v345, %v364
        %v366 = vmul.f32 %v346, %v364
        %v369 = vrot.slane %v365, 2
        %v370 = vrot.slane %v366, 2
        %v373 = vadd.f32 %v361, %v369
        %v374 = vadd.f32 %v362, %v370
        %s375 = sld [smem:[#allocation3 + $0x180]]
        %v376 = vstv %s375
        %v377 = vmul.f32 %v345, %v376
        %v378 = vmul.f32 %v346, %v376
        %v381 = vrot.slane %v377, 3
        %v382 = vrot.slane %v378, 3
        %v385 = vadd.f32 %v373, %v381
        %v386 = vadd.f32 %v374, %v382
        %s387 = sld [smem:[#allocation3 + $0x200]]
        %v388 = vstv %s387
        %v389 = vmul.f32 %v345, %v388
        %v390 = vmul.f32 %v346, %v388
        %v393 = vrot.slane %v389, 4
        %v394 = vrot.slane %v390, 4
        %v397 = vadd.f32 %v385, %v393
        %v398 = vadd.f32 %v386, %v394
        %s399 = sld [smem:[#allocation3 + $0x280]]
        %v400 = vstv %s399
        %v401 = vmul.f32 %v345, %v400
        %v402 = vmul.f32 %v346, %v400
        %v405 = vrot.slane %v401, 5
        %v406 = vrot.slane %v402, 5
        %v409 = vadd.f32 %v397, %v405
        %v410 = vadd.f32 %v398, %v406
        %s411 = sld [smem:[#allocation5]]
        %v412 = vstv %s411
        %v413 = vadd.f32 %v409, %v412
        %v414 = vadd.f32 %v410, %v412
        %v415 = vmax.f32 %v413, 0.0
        %v416 = vmax.f32 %v414, 0.0
        %s417 = sld [smem:[#allocation3 + $0x1]]
        %v418 = vstv %s417
        %v419 = vmul.f32 %v345, %v418
        %v420 = vmul.f32 %v346, %v418
        %s421 = sld [smem:[#allocation3 + $0x81]]
        %v422 = vstv %s421
        %v423 = vmul.f32 %v345, %v422
        %v424 = vmul.f32 %v346, %v422
        %v427 = vrot.slane %v423, 1
        %v428 = vrot.slane %v424, 1
        %v431 = vadd.f32 %v419, %v427
        %v432 = vadd.f32 %v420, %v428
        %s433 = sld [smem:[#allocation3 + $0x101]]
        %v434 = vstv %s433
        %v435 = vmul.f32 %v345, %v434
        %v436 = vmul.f32 %v346, %v434
        %v439 = vrot.slane %v435, 2
        %v440 = vrot.slane %v436, 2
        %v443 = vadd.f32 %v431, %v439
        %v444 = vadd.f32 %v432, %v440
        %s445 = sld [smem:[#allocation3 + $0x181]]
        %v446 = vstv %s445
        %v447 = vmul.f32 %v345, %v446
        %v448 = vmul.f32 %v346, %v446
        %v451 = vrot.slane %v447, 3
        %v452 = vrot.slane %v448, 3
        %v455 = vadd.f32 %v443, %v451
        %v456 = vadd.f32 %v444, %v452
        %s457 = sld [smem:[#allocation3 + $0x201]]
        %v458 = vstv %s457
        %v459 = vmul.f32 %v345, %v458
        %v460 = vmul.f32 %v346, %v458
        %v463 = vrot.slane %v459, 4
        %v464 = vrot.slane %v460, 4
        %v467 = vadd.f32 %v455, %v463
        %v468 = vadd.f32 %v456, %v464
        %s469 = sld [smem:[#allocation3 + $0x281]]
        %v470 = vstv %s469
        %v471 = vmul.f32 %v345, %v470
        %v472 = vmul.f32 %v346, %v470
        %v475 = vrot.slane %v471, 5
        %v476 = vrot.slane %v472, 5
        %v479 = vadd.f32 %v467, %v475
        %v480 = vadd.f32 %v468, %v476
        %s481 = sld [smem:[#allocation5 + $0x1]]
        %v482 = vstv %s481
        %v483 = vadd.f32 %v479, %v482
        %v484 = vadd.f32 %v480, %v482
        %v485 = vmax.f32 %v483, 0.0
        %v486 = vmax.f32 %v484, 0.0
        %s487 = sld [smem:[#allocation3 + $0x2]]
        %v488 = vstv %s487
        %v489 = vmul.f32 %v345, %v488
        %v490 = vmul.f32 %v346, %v488
        %s491 = sld [smem:[#allocation3 + $0x82]]
        %v492 = vstv %s491
        %v493 = vmul.f32 %v345, %v492
        %v494 = vmul.f32 %v346, %v492
        %v497 = vrot.slane %v493, 1
        %v498 = vrot.slane %v494, 1
        %v501 = vadd.f32 %v489, %v497
        %v502 = vadd.f32 %v490, %v498
        %s503 = sld [smem:[#allocation3 + $0x102]]
        %v504 = vstv %s503
        %v505 = vmul.f32 %v345, %v504
        %v506 = vmul.f32 %v346, %v504
        %v509 = vrot.slane %v505, 2
        %v510 = vrot.slane %v506, 2
        %v513 = vadd.f32 %v501, %v509
        %v514 = vadd.f32 %v502, %v510
        %s515 = sld [smem:[#allocation3 + $0x182]]
        %v516 = vstv %s515
        %v517 = vmul.f32 %v345, %v516
        %v518 = vmul.f32 %v346, %v516
        %v521 = vrot.slane %v517, 3
        %v522 = vrot.slane %v518, 3
        %v525 = vadd.f32 %v513, %v521
        %v526 = vadd.f32 %v514, %v522
        %s527 = sld [smem:[#allocation3 + $0x202]]
        %v528 = vstv %s527
        %v529 = vmul.f32 %v345, %v528
        %v530 = vmul.f32 %v346, %v528
        %v533 = vrot.slane %v529, 4
        %v534 = vrot.slane %v530, 4
        %v537 = vadd.f32 %v525, %v533
        %v538 = vadd.f32 %v526, %v534
        %s539 = sld [smem:[#allocation3 + $0x282]]
        %v540 = vstv %s539
        %v541 = vmul.f32 %v345, %v540
        %v542 = vmul.f32 %v346, %v540
        %v545 = vrot.slane %v541, 5
        %v546 = vrot.slane %v542, 5
        %v549 = vadd.f32 %v537, %v545
        %v550 = vadd.f32 %v538, %v546
        %s551 = sld [smem:[#allocation5 + $0x2]]
        %v552 = vstv %s551
        %v553 = vadd.f32 %v549, %v552
        %v554 = vadd.f32 %v550, %v552
        %v555 = vmax.f32 %v553, 0.0
        %v556 = vmax.f32 %v554, 0.0
        %s557 = sld [smem:[#allocation3 + $0x3]]
        %v558 = vstv %s557
        %v559 = vmul.f32 %v345, %v558
        %v560 = vmul.f32 %v346, %v558
        %s561 = sld [smem:[#allocation3 + $0x83]]
        %v562 = vstv %s561
        %v563 = vmul.f32 %v345, %v562
        %v564 = vmul.f32 %v346, %v562
        %v567 = vrot.slane %v563, 1
        %v568 = vrot.slane %v564, 1
        %v571 = vadd.f32 %v559, %v567
        %v572 = vadd.f32 %v560, %v568
        %s573 = sld [smem:[#allocation3 + $0x103]]
        %v574 = vstv %s573
        %v575 = vmul.f32 %v345, %v574
        %v576 = vmul.f32 %v346, %v574
        %v579 = vrot.slane %v575, 2
        %v580 = vrot.slane %v576, 2
        %v583 = vadd.f32 %v571, %v579
        %v584 = vadd.f32 %v572, %v580
        %s585 = sld [smem:[#allocation3 + $0x183]]
        %v586 = vstv %s585
        %v587 = vmul.f32 %v345, %v586
        %v588 = vmul.f32 %v346, %v586
        %v591 = vrot.slane %v587, 3
        %v592 = vrot.slane %v588, 3
        %v595 = vadd.f32 %v583, %v591
        %v596 = vadd.f32 %v584, %v592
        %s597 = sld [smem:[#allocation3 + $0x203]]
        %v598 = vstv %s597
        %v599 = vmul.f32 %v345, %v598
        %v600 = vmul.f32 %v346, %v598
        %v603 = vrot.slane %v599, 4
        %v604 = vrot.slane %v600, 4
        %v607 = vadd.f32 %v595, %v603
        %v608 = vadd.f32 %v596, %v604
        %s609 = sld [smem:[#allocation3 + $0x283]]
        %v610 = vstv %s609
        %v611 = vmul.f32 %v345, %v610
        %v612 = vmul.f32 %v346, %v610
        %v615 = vrot.slane %v611, 5
        %v616 = vrot.slane %v612, 5
        %v619 = vadd.f32 %v607, %v615
        %v620 = vadd.f32 %v608, %v616
        %s621 = sld [smem:[#allocation5 + $0x3]]
        %v622 = vstv %s621
        %v623 = vadd.f32 %v619, %v622
        %v624 = vadd.f32 %v620, %v622
        %v625 = vmax.f32 %v623, 0.0
        %v626 = vmax.f32 %v624, 0.0
        %s627 = sld [smem:[#allocation3 + $0x4]]
        %v628 = vstv %s627
        %v629 = vmul.f32 %v345, %v628
        %v630 = vmul.f32 %v346, %v628
        %s631 = sld [smem:[#allocation3 + $0x84]]
        %v632 = vstv %s631
        %v633 = vmul.f32 %v345, %v632
        %v634 = vmul.f32 %v346, %v632
        %v637 = vrot.slane %v633, 1
        %v638 = vrot.slane %v634, 1
        %v641 = vadd.f32 %v629, %v637
        %v642 = vadd.f32 %v630, %v638
        %s643 = sld [smem:[#allocation3 + $0x104]]
        %v644 = vstv %s643
        %v645 = vmul.f32 %v345, %v644
        %v646 = vmul.f32 %v346, %v644
        %v649 = vrot.slane %v645, 2
        %v650 = vrot.slane %v646, 2
        %v653 = vadd.f32 %v641, %v649
        %v654 = vadd.f32 %v642, %v650
        %s655 = sld [smem:[#allocation3 + $0x184]]
        %v656 = vstv %s655
        %v657 = vmul.f32 %v345, %v656
        %v658 = vmul.f32 %v346, %v656
        %v661 = vrot.slane %v657, 3
        %v662 = vrot.slane %v658, 3
        %v665 = vadd.f32 %v653, %v661
        %v666 = vadd.f32 %v654, %v662
        %s667 = sld [smem:[#allocation3 + $0x204]]
        %v668 = vstv %s667
        %v669 = vmul.f32 %v345, %v668
        %v670 = vmul.f32 %v346, %v668
        %v673 = vrot.slane %v669, 4
        %v674 = vrot.slane %v670, 4
        %v677 = vadd.f32 %v665, %v673
        %v678 = vadd.f32 %v666, %v674
        %s679 = sld [smem:[#allocation3 + $0x284]]
        %v680 = vstv %s679
        %v681 = vmul.f32 %v345, %v680
        %v682 = vmul.f32 %v346, %v680
        %v685 = vrot.slane %v681, 5
        %v686 = vrot.slane %v682, 5
        %v689 = vadd.f32 %v677, %v685
        %v690 = vadd.f32 %v678, %v686
        %s691 = sld [smem:[#allocation5 + $0x4]]
        %v692 = vstv %s691
        %v693 = vadd.f32 %v689, %v692
        %v694 = vadd.f32 %v690, %v692
        %v695 = vmax.f32 %v693, 0.0
        %v696 = vmax.f32 %v694, 0.0
        %s697 = sld [smem:[#allocation7]]
        %v698 = vstv %s697
        %v699 = vmul.f32 %v415, %v698
        %v700 = vmul.f32 %v416, %v698
        %s701 = sld [smem:[#allocation7 + $0x80]]
        %v702 = vstv %s701
        %v703 = vmul.f32 %v485, %v702
        %v704 = vmul.f32 %v486, %v702
        %v705 = vadd.f32 %v699, %v703
        %v706 = vadd.f32 %v700, %v704
        %s707 = sld [smem:[#allocation7 + $0x100]]
        %v708 = vstv %s707
        %v709 = vmul.f32 %v555, %v708
        %v710 = vmul.f32 %v556, %v708
        %v711 = vadd.f32 %v705, %v709
        %v712 = vadd.f32 %v706, %v710
        %s713 = sld [smem:[#allocation7 + $0x180]]
        %v714 = vstv %s713
        %v715 = vmul.f32 %v625, %v714
        %v716 = vmul.f32 %v626, %v714
        %v717 = vadd.f32 %v711, %v715
        %v718 = vadd.f32 %v712, %v716
        %s719 = sld [smem:[#allocation7 + $0x200]]
        %v720 = vstv %s719
        %v721 = vmul.f32 %v695, %v720
        %v722 = vmul.f32 %v696, %v720
        %v723 = vadd.f32 %v717, %v721
        %v724 = vadd.f32 %v718, %v722
        %s725 = sld [smem:[#allocation8]]
        %v726 = vstv %s725
        %v727 = vadd.f32 %v723, %v726
        %v728 = vadd.f32 %v724, %v726
        %v729 = vmax.f32 %v727, 0.0
        %v730 = vmax.f32 %v728, 0.0
        %s731 = sld [smem:[#allocation7 + $0x1]]
        %v732 = vstv %s731
        %v733 = vmul.f32 %v415, %v732
        %v734 = vmul.f32 %v416, %v732
        %s735 = sld [smem:[#allocation7 + $0x81]]
        %v736 = vstv %s735
        %v737 = vmul.f32 %v485, %v736
        %v738 = vmul.f32 %v486, %v736
        %v739 = vadd.f32 %v733, %v737
        %v740 = vadd.f32 %v734, %v738
        %s741 = sld [smem:[#allocation7 + $0x101]]
        %v742 = vstv %s741
        %v743 = vmul.f32 %v555, %v742
        %v744 = vmul.f32 %v556, %v742
        %v745 = vadd.f32 %v739, %v743
        %v746 = vadd.f32 %v740, %v744
        %s747 = sld [smem:[#allocation7 + $0x181]]
        %v748 = vstv %s747
        %v749 = vmul.f32 %v625, %v748
        %v750 = vmul.f32 %v626, %v748
        %v751 = vadd.f32 %v745, %v749
        %v752 = vadd.f32 %v746, %v750
        %s753 = sld [smem:[#allocation7 + $0x201]]
        %v754 = vstv %s753
        %v755 = vmul.f32 %v695, %v754
        %v756 = vmul.f32 %v696, %v754
        %v757 = vadd.f32 %v751, %v755
        %v758 = vadd.f32 %v752, %v756
        %s759 = sld [smem:[#allocation8 + $0x1]]
        %v760 = vstv %s759
        %v761 = vadd.f32 %v757, %v760
        %v762 = vadd.f32 %v758, %v760
        %v763 = vmax.f32 %v761, 0.0
        %v764 = vmax.f32 %v762, 0.0
        %s765 = sld [smem:[#allocation7 + $0x2]]
        %v766 = vstv %s765
        %v767 = vmul.f32 %v415, %v766
        %v768 = vmul.f32 %v416, %v766
        %s769 = sld [smem:[#allocation7 + $0x82]]
        %v770 = vstv %s769
        %v771 = vmul.f32 %v485, %v770
        %v772 = vmul.f32 %v486, %v770
        %v773 = vadd.f32 %v767, %v771
        %v774 = vadd.f32 %v768, %v772
        %s775 = sld [smem:[#allocation7 + $0x102]]
        %v776 = vstv %s775
        %v777 = vmul.f32 %v555, %v776
        %v778 = vmul.f32 %v556, %v776
        %v779 = vadd.f32 %v773, %v777
        %v780 = vadd.f32 %v774, %v778
        %s781 = sld [smem:[#allocation7 + $0x182]]
        %v782 = vstv %s781
        %v783 = vmul.f32 %v625, %v782
        %v784 = vmul.f32 %v626, %v782
        %v785 = vadd.f32 %v779, %v783
        %v786 = vadd.f32 %v780, %v784
        %s787 = sld [smem:[#allocation7 + $0x202]]
        %v788 = vstv %s787
        %v789 = vmul.f32 %v695, %v788
        %v790 = vmul.f32 %v696, %v788
        %v791 = vadd.f32 %v785, %v789
        %v792 = vadd.f32 %v786, %v790
        %s793 = sld [smem:[#allocation8 + $0x2]]
        %v794 = vstv %s793
        %v795 = vadd.f32 %v791, %v794
        %v796 = vadd.f32 %v792, %v794
        %v797 = vmax.f32 %v795, 0.0
        %v798 = vmax.f32 %v796, 0.0
        %s799 = sld [smem:[#allocation10]]
        %v800 = vstv %s799
        %v801 = vmul.f32 %v729, %v800
        %v802 = vmul.f32 %v730, %v800
        %s803 = sld [smem:[#allocation10 + $0x80]]
        %v804 = vstv %s803
        %v805 = vmul.f32 %v763, %v804
        %v806 = vmul.f32 %v764, %v804
        %v807 = vadd.f32 %v801, %v805
        %v808 = vadd.f32 %v802, %v806
        %s809 = sld [smem:[#allocation10 + $0x100]]
        %v810 = vstv %s809
        %v811 = vmul.f32 %v797, %v810
        %v812 = vmul.f32 %v798, %v810
        %v813 = vadd.f32 %v807, %v811
        %v814 = vadd.f32 %v808, %v812
        %s815 = sld [smem:[#allocation2]]
        %v816 = vstv %s815
        %v817 = vadd.f32 %v813, %v816
        %v818 = vadd.f32 %v814, %v816
        %v819 = vsub.f32 0.0, %v817
        %v820 = vsub.f32 0.0, %v818
        %v821 = vmul.f32 %v819, 1.442695
        %v822 = vpow.pop %v821
        %v823 = vmul.f32 %v820, 1.442695
        %v824 = vpow.pop %v823
        %v825 = vadd.f32 %v822, 1.0
        %v826 = vadd.f32 %v824, 1.0
        %v827 = vrcp.pop %v825
        %v828 = vmul.f32 1.0, %v827
        %v829 = vrcp.pop %v826
        %v830 = vmul.f32 1.0, %v829
        %v833 = vcombine.low %v828, %v830
        %v835 = vunpack.c.l.s4 1966171168
        %v836 = vunpack.c.0.s8 %v835
        %v837 = vlaneseq
        %v838 = vshrl.u32 %v837, 7
        %v839 = vsub.s32 %v836, %v838
        %v840 = vrot.slane %v833, %v839
        %v842 = vunpack.c.l.s4 1966171168
        %v843 = vunpack.c.0.s8 %v842
        %v844 = vlaneseq
        %v845 = vshrl.u32 %v844, 7
        %v846 = vsub.s32 %v843, %v845
        %v847 = vrot.slane %v840, %v846
        %v849 = vlaneseq
        %vm850 = vcmp.ge.s32.totalorder %v849, 0
        %vm851 = vcmp.lt.s32.totalorder %v849, 256
        %vm852 = vmand %vm850, %vm851
        %853 = vst.msk [vmem:[%s343] sm:$0x3] %vm852, %v847
        %s854 = smul.u32 2, %s22
        %p855 = scmp.lt.s32.totalorder %s854, 7
        %s856 = scalar_select %p855, %s854, 7
        %s857 = scalar_lea.vmem %s7, %s856
        // Predicated region
        $region69: #{net_forward.1} parent=47 // pred_check
          %p858 = pneg %p192
        $region70: #{net_forward.1} parent=47 // pred_check_branch
          %860 = sbr.rel (%p858) target = $region72
        $region71: #{net_forward.1} parent=47 // pred_region
          %s861 = smul.u32 2, %s22
        $region72: #{net_forward.1} parent=47 // pred_fallthru
          _
      $region48: #{net_forward.1} parent=5 // pred_fallthru
        _
      %p862 = scmp.le.s32.totalorder 2, %s17
      // Predicated region
      $region73: #{net_forward.1} parent=5 // pred_check
        %p863 = pneg %p862
      $region74: #{net_forward.1} parent=5 // pred_check_branch
        %865 = sbr.rel (%p863) target = $region76
      $region75: #{net_forward.1} parent=5 // pred_region
        %s866 = ssub.s32 %s17, 2
        // Predicated region
        $region77: #{net_forward.1} parent=75 // pred_check
          %p867 = pneg %p198
        $region78: #{net_forward.1} parent=75 // pred_check_branch
          %869 = sbr.rel (%p867) target = $region80
        $region79: #{net_forward.1} parent=75 // pred_region
          %s870 = smul.u32 2, %s23
          %p871 = scmp.lt.s32.totalorder %s870, 7
          %s872 = scalar_select %p871, %s870, 7
          %s873 = scalar_lea.vmem %s7, %s872
        $region80: #{net_forward.1} parent=75 // pred_fallthru
          _
      $region76: #{net_forward.1} parent=5 // pred_fallthru
        _
    $region6: #{net_forward.1} parent=1 // loop_footer
      %s21 = sadd.s32 1, %s17
    $region7: #{net_forward.1} parent=1 // loop_footer_branch
      %16 = sbr.rel target = $region3
    $region8: #{net_forward.1} parent=1 // loop_exit
      _
    %874 = vsyncpa [#allocation4], 1
    %s875 = scalar_lea.sflag [#allocation4], 1
    %876 = vsyncpa %s875, 1
    %877 = vsyncpa [#allocation6], 1
    %878 = vsyncpa [#allocation9], 1

</llo_original>
